<compile_context>
chip_gen: v6e
topology: v6e:2x2x1
jax: 0.10.0
libtpu: 0.0.40
codegen_flags: <defaults>
</compile_context>

<pallas_src>
import functools

import jax
import jax.numpy as jnp
from jax.experimental import pallas as pl
from jax.experimental.pallas import tpu as pltpu

LANE = 128
SUBLANE = 8


def _round_up(n, m):
    return ((n + m - 1) // m) * m


def _vmem_limit_bytes():
    """Generation-aware VMEM budget (~3/4 of physical, capped)."""
    cap = 64 * 1024 * 1024  # conservative default (v7x-sized)
    try:
        cap = int(pltpu.get_tpu_info().vmem_capacity_bytes)
    except Exception:
        pass
    return min((cap * 3) // 4, 112 * 1024 * 1024)


# ---------------------------------------------------------------------------
# Fused single-pass kernel: pool + MLP + sigmoid + broadcast multiply.
# ---------------------------------------------------------------------------
def _fused_kernel(x_ref, w1_ref, b1_ref, w2_ref, b2_ref, o_ref, *, inv_hw):
    xf = x_ref[...].astype(jnp.float32)                 # (1, C, HW) f32
    avg = jnp.sum(xf, axis=-1) * inv_hw                 # (1, C)
    mx = jnp.max(xf, axis=-1)                           # (1, C)

    w1 = w1_ref[...]                                    # (C, Hd_pad) f32
    b1 = b1_ref[...]                                    # (1, Hd_pad)
    w2 = w2_ref[...]                                    # (Hd_pad, C)
    b2 = b2_ref[...]                                    # (1, C)

    def mlp(p):
        h = jnp.dot(p, w1, preferred_element_type=jnp.float32) + b1
        h = jnp.maximum(h, 0.0)
        return jnp.dot(h, w2, preferred_element_type=jnp.float32) + b2

    att = mlp(avg) + mlp(mx)                            # (1, C)
    scale = 1.0 / (1.0 + jnp.exp(-att))                 # sigmoid, f32
    o_ref[...] = (xf * scale[:, :, None]).astype(o_ref.dtype)


# ---------------------------------------------------------------------------
# Fallback pass 1: streamed global avg / max pooling (cdiv grid, masked tail).
# ---------------------------------------------------------------------------
def _pool_kernel(x_ref, avg_ref, max_ref, *, hw, hw_tile, inv_hw):
    t = pl.program_id(1)
    n_t = pl.num_programs(1)

    @pl.when(t == 0)
    def _init():
        avg_ref[...] = jnp.zeros(avg_ref.shape, avg_ref.dtype)
        max_ref[...] = jnp.full(max_ref.shape, -jnp.inf, max_ref.dtype)

    x = x_ref[...].astype(jnp.float32)                  # (1, C, hw_tile) f32
    tail = hw % hw_tile                                 # static Python int

    if tail == 0:
        # No ragged tail anywhere: pure unmasked accumulation.
        avg_ref[...] += jnp.sum(x, axis=-1, keepdims=True)
        max_ref[...] = jnp.maximum(max_ref[...],
                                   jnp.max(x, axis=-1, keepdims=True))
    else:
        # Mask only on the last tile (OOB lanes of the partial block are
        # unspecified, so both the sum and the max must be masked there).
        @pl.when(t < n_t - 1)
        def _full_tiles():
            avg_ref[...] += jnp.sum(x, axis=-1, keepdims=True)
            max_ref[...] = jnp.maximum(max_ref[...],
                                       jnp.max(x, axis=-1, keepdims=True))

        @pl.when(t == n_t - 1)
        def _tail_tile():
            lane = jax.lax.broadcasted_iota(jnp.int32, x.shape, 2)
            valid = lane < tail
            avg_ref[...] += jnp.sum(jnp.where(valid, x, 0.0),
                                    axis=-1, keepdims=True)
            max_ref[...] = jnp.maximum(
                max_ref[...],
                jnp.max(jnp.where(valid, x, -jnp.inf), axis=-1, keepdims=True))

    @pl.when(t == n_t - 1)
    def _finalize():
        avg_ref[...] = avg_ref[...] * inv_hw


# ---------------------------------------------------------------------------
# Fallback pass 2: broadcast multiply by the channel gate.
# ---------------------------------------------------------------------------
def _scale_kernel(x_ref, s_ref, o_ref):
    xf = x_ref[...].astype(jnp.float32)
    o_ref[...] = (xf * s_ref[...]).astype(o_ref.dtype)


def channel_gate(x, w1, b1, w2, b2, *, force_two_pass=False, hw_tile=None):
    """CBAM ChannelGate forward (pool_types=['avg', 'max']).

    x: (B, C, H, W).  Weights stored (in, out): w1 (C, Hd), w2 (Hd, C), so
    y = p @ w + b matches PyTorch's y = p @ W.T + b.
    """
    B, C, H, W = x.shape
    HW = H * W
    inv_hw = 1.0 / float(HW)

    b1 = jnp.asarray(b1).reshape(1, -1)
    b2 = jnp.asarray(b2).reshape(1, -1)
    Hd = w1.shape[1]

    x_flat = x.reshape(B, C, HW)
    vmem_limit = _vmem_limit_bytes()

    # Conservative VMEM estimate for the fused per-batch-slab kernel:
    # 2x input + 2x output double-buffers + f32 temporaries + small weights.
    c_pad = _round_up(C, SUBLANE)
    hw_pad = _round_up(HW, LANE)
    io_buf = c_pad * hw_pad * x.dtype.itemsize
    f32_buf = c_pad * hw_pad * 4
    fused_need = 4 * io_buf + 2 * f32_buf + (1 << 20)
    use_fused = (not force_two_pass) and fused_need <= vmem_limit

    if use_fused:
        # Zero-pad the tiny hidden dim to a lane multiple (mathematically
        # exact: padded hidden units are 0 after ReLU and their w2 rows are 0).
        hd_pad = max(LANE, _round_up(Hd, LANE))
        w1p = jnp.zeros((C, hd_pad), jnp.float32).at[:, :Hd].set(
            w1.astype(jnp.float32))
        b1p = jnp.zeros((1, hd_pad), jnp.float32).at[:, :Hd].set(
            b1.astype(jnp.float32))
        w2p = jnp.zeros((hd_pad, C), jnp.float32).at[:Hd, :].set(
            w2.astype(jnp.float32))
        b2p = b2.astype(jnp.float32)

        # TODO(synk): for B == 1 on v7x the fused path uses a single TensorCore;
        # a channel-split grid would need a cross-tile pool exchange.
        out = pl.pallas_call(
            functools.partial(_fused_kernel, inv_hw=inv_hw),
            out_shape=jax.ShapeDtypeStruct((B, C, HW), x.dtype),
            grid_spec=pltpu.PrefetchScalarGridSpec(
                num_scalar_prefetch=0,
                grid=(B,),
                in_specs=[
                    pl.BlockSpec((1, C, HW), lambda b: (b, 0, 0)),
                    pl.BlockSpec((C, hd_pad), lambda b: (0, 0)),
                    pl.BlockSpec((1, hd_pad), lambda b: (0, 0)),
                    pl.BlockSpec((hd_pad, C), lambda b: (0, 0)),
                    pl.BlockSpec((1, C), lambda b: (0, 0)),
                ],
                out_specs=pl.BlockSpec((1, C, HW), lambda b: (b, 0, 0)),
            ),
            compiler_params=pltpu.CompilerParams(
                dimension_semantics=("parallel",),
                vmem_limit_bytes=vmem_limit),
        )(x_flat, w1p, b1p, w2p, b2p)
        return out.reshape(B, C, H, W)

    # ---- Fallback: two-pass streaming (per-batch slab too big for VMEM) ----
    if hw_tile is None:
        target_tile_bytes = max(LANE * C * 4, vmem_limit // 12)
        hw_tile = (target_tile_bytes // (C * 4)) // LANE * LANE
        hw_tile = max(LANE, min(hw_tile, hw_pad))
    n_t = pl.cdiv(HW, hw_tile)

    avg_pool, max_pool = pl.pallas_call(
        functools.partial(_pool_kernel, hw=HW, hw_tile=hw_tile, inv_hw=inv_hw),
        out_shape=(jax.ShapeDtypeStruct((B, C, 1), jnp.float32),
                   jax.ShapeDtypeStruct((B, C, 1), jnp.float32)),
        grid_spec=pltpu.PrefetchScalarGridSpec(
            num_scalar_prefetch=0,
            grid=(B, n_t),
            in_specs=[pl.BlockSpec((1, C, hw_tile), lambda b, t: (b, 0, t))],
            out_specs=[pl.BlockSpec((1, C, 1), lambda b, t: (b, 0, 0)),
                       pl.BlockSpec((1, C, 1), lambda b, t: (b, 0, 0))],
        ),
        compiler_params=pltpu.CompilerParams(
            dimension_semantics=("parallel", "arbitrary"),
            vmem_limit_bytes=vmem_limit),
    )(x_flat)

    # Tiny MLP + sigmoid in plain JAX (off the memory-bound hot path).
    avg_pool = avg_pool[:, :, 0]
    max_pool = max_pool[:, :, 0]
    w1f, b1f = w1.astype(jnp.float32), b1.astype(jnp.float32)
    w2f, b2f = w2.astype(jnp.float32), b2.astype(jnp.float32)

    def mlp(p):
        h = jnp.maximum(p @ w1f + b1f, 0.0)
        return h @ w2f + b2f

    att = mlp(avg_pool) + mlp(max_pool)
    scale = jax.nn.sigmoid(att)[:, :, None].astype(jnp.float32)   # (B, C, 1)

    out = pl.pallas_call(
        _scale_kernel,
        out_shape=jax.ShapeDtypeStruct((B, C, HW), x.dtype),
        grid_spec=pltpu.PrefetchScalarGridSpec(
            num_scalar_prefetch=0,
            grid=(B, n_t),
            in_specs=[pl.BlockSpec((1, C, hw_tile), lambda b, t: (b, 0, t)),
                      pl.BlockSpec((1, C, 1), lambda b, t: (b, 0, 0))],
            out_specs=pl.BlockSpec((1, C, hw_tile), lambda b, t: (b, 0, t)),
        ),
        compiler_params=pltpu.CompilerParams(
            dimension_semantics=("parallel", "parallel"),
            vmem_limit_bytes=vmem_limit),
    )(x_flat, scale)
    return out.reshape(B, C, H, W)


def channel_gate_reference(x, w1, b1, w2, b2):
    """Plain-JAX reference mirroring the PyTorch forward (pool_types=['avg','max'])."""
    xf = x.astype(jnp.float32)
    avg_pool = jnp.mean(xf, axis=(2, 3))   # (B, C)
    max_pool = jnp.max(xf, axis=(2, 3))    # (B, C)
    b1r = jnp.asarray(b1).reshape(1, -1)
    b2r = jnp.asarray(b2).reshape(1, -1)

    def mlp(p):
        h = jnp.maximum(p @ w1.astype(jnp.float32) + b1r, 0.0)
        return h @ w2.astype(jnp.float32) + b2r

    att = mlp(avg_pool) + mlp(max_pool)
    scale = jax.nn.sigmoid(att)[:, :, None, None]
    return (xf * scale).astype(x.dtype)


if __name__ == "__main__":
    # Shapes consistent with the module: gate_channels=32, reduction_ratio=16.
    B, C, H, W = 2, 32, 16, 16
    reduction_ratio = 16
    Hd = max(1, C // reduction_ratio)   # hidden = 2

    key = jax.random.PRNGKey(0)
    kx, k1, kb1, k2, kb2 = jax.random.split(key, 5)

    x = jax.random.normal(kx, (B, C, H, W), dtype=jnp.float32)

    # Parameters stored (in, out) so y = p @ W + b matches PyTorch y = p @ W_pt.T + b.
    w1 = jax.random.normal(k1, (C, Hd), dtype=jnp.float32) * (1.0 / jnp.sqrt(C))
    b1 = jax.random.normal(kb1, (1, Hd), dtype=jnp.float32) * 0.01
    w2 = jax.random.normal(k2, (Hd, C), dtype=jnp.float32) * (1.0 / jnp.sqrt(Hd))
    b2 = jax.random.normal(kb2, (1, C), dtype=jnp.float32) * 0.01

    # Case 1: fused single-pass kernel, HW a multiple of 128.
    out = jax.block_until_ready(channel_gate(x, w1, b1, w2, b2))
    ref = channel_gate_reference(x, w1, b1, w2, b2)
    assert out.shape == (B, C, H, W)
    assert jnp.allclose(out, ref, atol=1e-5, rtol=1e-5), "mismatch (fused, aligned HW)"

    # Case 2: fused kernel on a non-128-multiple spatial size (13x13 = 169),
    # exercising Mosaic's masked reductions over the ragged last dim.
    H2 = W2 = 13
    x2 = jax.random.normal(kx, (B, C, H2, W2), dtype=jnp.float32)
    out2 = jax.block_until_ready(channel_gate(x2, w1, b1, w2, b2))
    ref2 = channel_gate_reference(x2, w1, b1, w2, b2)
    assert jnp.allclose(out2, ref2, atol=1e-5, rtol=1e-5), "mismatch (fused, ragged HW)"

    # Case 3: forced two-pass fallback (streamed tiles, cdiv grid, ragged-tail
    # masking, partial last-block writeback).
    out3 = jax.block_until_ready(
        channel_gate(x2, w1, b1, w2, b2, force_two_pass=True, hw_tile=128))
    assert jnp.allclose(out3, ref2, atol=1e-5, rtol=1e-5), "mismatch (two-pass fallback)"

    print("KERNEL_OK")
</pallas_src>

<mosaic_0001>
module attributes {stable_mosaic.version = 11 : i64} {
  func.func @_fused_kernel(%arg0: i32, %arg1: memref<1x32x256xf32, #tpu.memory_space<vmem>>, %arg2: memref<32x128xf32, #tpu.memory_space<vmem>>, %arg3: memref<1x128xf32, #tpu.memory_space<vmem>>, %arg4: memref<128x32xf32, #tpu.memory_space<vmem>>, %arg5: memref<1x32xf32, #tpu.memory_space<vmem>>, %arg6: memref<1x32x256xf32, #tpu.memory_space<vmem>>) attributes {dimension_semantics = [#tpu.dimension_semantics<parallel>], iteration_bounds = array<i64: 2>, scalar_prefetch = 0 : i64, scratch_operands = 0 : i64, tpu.core_type = #tpu.core_type<tc>, window_params = [{transform_indices = @transform_0, window_bounds = array<i64: 1, 32, 256>}, {pipeline_mode = #tpu.pipeline_mode<synchronous>, transform_indices = @transform_1, window_bounds = array<i64: 32, 128>}, {pipeline_mode = #tpu.pipeline_mode<synchronous>, transform_indices = @transform_2, window_bounds = array<i64: 1, 128>}, {pipeline_mode = #tpu.pipeline_mode<synchronous>, transform_indices = @transform_3, window_bounds = array<i64: 128, 32>}, {pipeline_mode = #tpu.pipeline_mode<synchronous>, transform_indices = @transform_4, window_bounds = array<i64: 1, 32>}, {transform_indices = @transform_5, window_bounds = array<i64: 1, 32, 256>}]} {
    %c0 = arith.constant 0 : index
    %c0_0 = arith.constant 0 : index
    %c0_1 = arith.constant 0 : index
    %0 = vector.load %arg1[%c0, %c0_0, %c0_1] : memref<1x32x256xf32, #tpu.memory_space<vmem>>, vector<1x32x256xf32>
    %cst = arith.constant dense<0.000000e+00> : vector<1x32xf32>
    %1 = vector.multi_reduction <add>, %0, %cst [2] : vector<1x32x256xf32> to vector<1x32xf32>
    %cst_2 = arith.constant 3.906250e-03 : f32
    %2 = vector.broadcast %cst_2 : f32 to vector<1x32xf32>
    %3 = arith.mulf %1, %2 : vector<1x32xf32>
    %cst_3 = arith.constant dense<0xFF800000> : vector<1x32xf32>
    %4 = vector.multi_reduction <maximumf>, %0, %cst_3 [2] : vector<1x32x256xf32> to vector<1x32xf32>
    %c0_4 = arith.constant 0 : index
    %c0_5 = arith.constant 0 : index
    %5 = vector.load %arg2[%c0_4, %c0_5] : memref<32x128xf32, #tpu.memory_space<vmem>>, vector<32x128xf32>
    %c0_6 = arith.constant 0 : index
    %c0_7 = arith.constant 0 : index
    %6 = vector.load %arg3[%c0_6, %c0_7] : memref<1x128xf32, #tpu.memory_space<vmem>>, vector<1x128xf32>
    %c0_8 = arith.constant 0 : index
    %c0_9 = arith.constant 0 : index
    %7 = vector.load %arg4[%c0_8, %c0_9] : memref<128x32xf32, #tpu.memory_space<vmem>>, vector<128x32xf32>
    %c0_10 = arith.constant 0 : index
    %c0_11 = arith.constant 0 : index
    %8 = vector.load %arg5[%c0_10, %c0_11] : memref<1x32xf32, #tpu.memory_space<vmem>>, vector<1x32xf32>
    %cst_12 = arith.constant dense<0.000000e+00> : vector<1x128xf32>
    %9 = tpu.matmul %3, %5, %cst_12 {dimension_numbers = #tpu.dot_dimension_numbers<[1], [0], [0], [1], [0, 0, 1, 1], [], []>} : vector<1x32xf32>, vector<32x128xf32>, vector<1x128xf32> -> vector<1x128xf32>
    %10 = arith.addf %9, %6 : vector<1x128xf32>
    %cst_13 = arith.constant 0.000000e+00 : f32
    %11 = vector.broadcast %cst_13 : f32 to vector<1x128xf32>
    %12 = arith.maximumf %10, %11 : vector<1x128xf32>
    %cst_14 = arith.constant dense<0.000000e+00> : vector<1x32xf32>
    %13 = tpu.matmul %12, %7, %cst_14 {dimension_numbers = #tpu.dot_dimension_numbers<[1], [0], [0], [1], [0, 0, 1, 1], [], []>} : vector<1x128xf32>, vector<128x32xf32>, vector<1x32xf32> -> vector<1x32xf32>
    %14 = arith.addf %13, %8 : vector<1x32xf32>
    %cst_15 = arith.constant dense<0.000000e+00> : vector<1x128xf32>
    %15 = tpu.matmul %4, %5, %cst_15 {dimension_numbers = #tpu.dot_dimension_numbers<[1], [0], [0], [1], [0, 0, 1, 1], [], []>} : vector<1x32xf32>, vector<32x128xf32>, vector<1x128xf32> -> vector<1x128xf32>
    %16 = arith.addf %15, %6 : vector<1x128xf32>
    %cst_16 = arith.constant 0.000000e+00 : f32
    %17 = vector.broadcast %cst_16 : f32 to vector<1x128xf32>
    %18 = arith.maximumf %16, %17 : vector<1x128xf32>
    %cst_17 = arith.constant dense<0.000000e+00> : vector<1x32xf32>
    %19 = tpu.matmul %18, %7, %cst_17 {dimension_numbers = #tpu.dot_dimension_numbers<[1], [0], [0], [1], [0, 0, 1, 1], [], []>} : vector<1x128xf32>, vector<128x32xf32>, vector<1x32xf32> -> vector<1x32xf32>
    %20 = arith.addf %19, %8 : vector<1x32xf32>
    %21 = arith.addf %14, %20 : vector<1x32xf32>
    %cst_18 = arith.constant 0.000000e+00 : f32
    %22 = vector.broadcast %cst_18 : f32 to vector<1x32xf32>
    %23 = arith.subf %22, %21 : vector<1x32xf32>
    %24 = math.exp %23 : vector<1x32xf32>
    %cst_19 = arith.constant 1.000000e+00 : f32
    %25 = vector.broadcast %cst_19 : f32 to vector<1x32xf32>
    %26 = arith.addf %25, %24 : vector<1x32xf32>
    %cst_20 = arith.constant 1.000000e+00 : f32
    %27 = vector.broadcast %cst_20 : f32 to vector<1x32xf32>
    %28 = arith.divf %27, %26 : vector<1x32xf32>
    %29 = vector.shape_cast %28 : vector<1x32xf32> to vector<1x32x1xf32>
    %30 = vector.broadcast %29 : vector<1x32x1xf32> to vector<1x32x256xf32>
    %31 = arith.mulf %0, %30 : vector<1x32x256xf32>
    %c0_21 = arith.constant 0 : index
    %c0_22 = arith.constant 0 : index
    %c0_23 = arith.constant 0 : index
    %32 = vector.load %arg6[%c0_21, %c0_22, %c0_23] : memref<1x32x256xf32, #tpu.memory_space<vmem>>, vector<1x32x256xf32>
    tpu.vector_store %arg6[%c0_21, %c0_22, %c0_23], %31 {strides = array<i32>} : memref<1x32x256xf32, #tpu.memory_space<vmem>>, vector<1x32x256xf32>,
    return
  }
  func.func @transform_0(%arg0: i32) -> (i32, i32, i32) {
    %c0_i32 = arith.constant 0 : i32
    %c0_i32_0 = arith.constant 0 : i32
    %c0_i32_1 = arith.constant 0 : i32
    return %arg0, %c0_i32, %c0_i32_0 : i32, i32, i32
  }
  func.func @transform_1(%arg0: i32) -> (i32, i32) {
    %c0_i32 = arith.constant 0 : i32
    %c0_i32_0 = arith.constant 0 : i32
    %c0_i32_1 = arith.constant 0 : i32
    return %c0_i32, %c0_i32_0 : i32, i32
  }
  func.func @transform_2(%arg0: i32) -> (i32, i32) {
    %c0_i32 = arith.constant 0 : i32
    %c0_i32_0 = arith.constant 0 : i32
    %c0_i32_1 = arith.constant 0 : i32
    return %c0_i32, %c0_i32_0 : i32, i32
  }
  func.func @transform_3(%arg0: i32) -> (i32, i32) {
    %c0_i32 = arith.constant 0 : i32
    %c0_i32_0 = arith.constant 0 : i32
    %c0_i32_1 = arith.constant 0 : i32
    return %c0_i32, %c0_i32_0 : i32, i32
  }
  func.func @transform_4(%arg0: i32) -> (i32, i32) {
    %c0_i32 = arith.constant 0 : i32
    %c0_i32_0 = arith.constant 0 : i32
    %c0_i32_1 = arith.constant 0 : i32
    return %c0_i32, %c0_i32_0 : i32, i32
  }
  func.func @transform_5(%arg0: i32) -> (i32, i32, i32) {
    %c0_i32 = arith.constant 0 : i32
    %c0_i32_0 = arith.constant 0 : i32
    %c0_i32_1 = arith.constant 0 : i32
    return %arg0, %c0_i32, %c0_i32_0 : i32, i32, i32
  }
}

</mosaic_0001>

<llo_original>
// kernel: tpu_custom_call.1
$region0: #{tpu_custom_call.1}
  #allocation0 [shape = 'u32[]', space=smem, size = 0x4, offset = 0x4, fixed_abs, tag = 'smem constant byte address 0x4 - core index']
  #allocation1 [shape = 'u32[144,128]{1,0:T(1,128)}', space=vmem, size = 0x12000, scoped, tag = 'internal scratch']
  %s0 = inlined_call_operand.vmem [shape: f32[2,32,256], index: 0, kind: input, shape index: {}]
  %s1 = inlined_call_operand.vmem [shape: f32[32,128], index: 1, kind: input, shape index: {}]
  %s2 = inlined_call_operand.vmem [shape: f32[1,128], index: 2, kind: input, shape index: {}]
  %s3 = inlined_call_operand.vmem [shape: f32[128,32], index: 3, kind: input, shape index: {}]
  %s4 = inlined_call_operand.vmem [shape: f32[1,32], index: 4, kind: input, shape index: {}]
  %s5 = inlined_call_operand.hbm [shape: f32[2,32,256], index: 5, kind: output, shape index: {}]
  %s6 = sld [smem:[#allocation0]]
  $region53: #{tpu_custom_call.1} parent=0
    _
  %s8 = ssub.s32 1, %s6
  %s9 = scalar_select 0, %s8, %s6
  $region1: #{tpu_custom_call.1} parent=0
    #allocation2 [shape = 'u8[65536]{0}', space=vmem, size = 0x10000, scoped, tag = 'output window, operand 0']
    #allocation3 [shape = 's32[2]{0}', space=sflag, size = 0x8, scoped, tag = 'scoped memory for tpu_custom_call.1']
    %10 = vsyncpa [#allocation3], 0
    %s11 = scalar_lea.sflag [#allocation3], 1
    %12 = vsyncpa %s11, 0
    loop: start=0, step=1, limit=4
    $region2: #{tpu_custom_call.1} parent=1 // loop_pre_header
      _
    $region3: #{tpu_custom_call.1} parent=1 // loop_header
      %s14 = sphi 0, %s18
      %p15 = scmp.ge.s32.totalorder %s14, 4
      %s24 = sphi 0, %s26
      %s27 = sphi 0, %s24
      %s28 = sphi 0, %s27
      %s44 = sphi 0, %s28
      %s48 = sphi 0, %s48
      %s50 = sphi 0, %s48
      %s51 = sphi 0, %s50
      %s65 = sphi 0, %s51
      %s69 = sphi 0, %s69
      %s71 = sphi 0, %s69
      %s72 = sphi 0, %s71
      %s86 = sphi 0, %s72
      %s90 = sphi 0, %s90
      %s92 = sphi 0, %s90
      %s93 = sphi 0, %s92
      %s107 = sphi 0, %s93
      %s111 = sphi 0, %s111
      %s113 = sphi 0, %s111
      %s114 = sphi 0, %s113
      %s128 = sphi 0, %s114
      %s134 = sphi 0, %s136
      %s137 = sphi 0, %s134
      %s138 = sphi 0, %s137
      %s154 = sphi 0, %s138
    $region4: #{tpu_custom_call.1} parent=1 // loop_header_branch
      %17 = sbr.rel (%p15) target = $region8
    $region5: #{tpu_custom_call.1} parent=1 // loop_body
      %s19 = ssub.s32 %s14, 1
      %s20 = ssub.s32 %s14, 2
      %s21 = sadd.s32 %s14, 1
      %s22 = ssub.s32 %s14, %s21
      %p23 = scmp.eq.s32.totalorder %s22, 0
      %s25 = sadd.s32 %s24, 1
      %s26 = scalar_select %p23, %s24, %s25
      %p29 = pneg %p23
      %p30 = scmp.eq.s32.totalorder %s14, 1
      %p31 = por %p29, %p30
      %p32 = scmp.ne.s32.totalorder %s24, %s27
      %p33 = scmp.eq.s32.totalorder %s14, 0
      %p34 = por %p32, %p33
      %p35 = scmp.ne.s32.totalorder %s24, %s27
      %p36 = scmp.eq.s32.totalorder %s19, 1
      %p37 = por %p35, %p36
      %p38 = scmp.ne.s32.totalorder %s27, %s28
      %p39 = scmp.eq.s32.totalorder %s19, 0
      %p40 = por %p38, %p39
      %p41 = scmp.ne.s32.totalorder %s27, %s28
      %p42 = scmp.eq.s32.totalorder %s20, 1
      %p43 = por %p41, %p42
      %p45 = scmp.ne.s32.totalorder %s28, %s44
      %p46 = scmp.eq.s32.totalorder %s20, 0
      %p47 = por %p45, %p46
      %s49 = sadd.s32 %s48, 1
      %p52 = scmp.eq.s32.totalorder %s14, 1
      %p53 = scmp.ne.s32.totalorder %s48, %s50
      %p54 = scmp.eq.s32.totalorder %s14, 0
      %p55 = por %p53, %p54
      %p56 = scmp.ne.s32.totalorder %s48, %s50
      %p57 = scmp.eq.s32.totalorder %s19, 1
      %p58 = por %p56, %p57
      %p59 = scmp.ne.s32.totalorder %s50, %s51
      %p60 = scmp.eq.s32.totalorder %s19, 0
      %p61 = por %p59, %p60
      %p62 = scmp.ne.s32.totalorder %s50, %s51
      %p63 = scmp.eq.s32.totalorder %s20, 1
      %p64 = por %p62, %p63
      %p66 = scmp.ne.s32.totalorder %s51, %s65
      %p67 = scmp.eq.s32.totalorder %s20, 0
      %p68 = por %p66, %p67
      %s70 = sadd.s32 %s69, 1
      %p73 = scmp.eq.s32.totalorder %s14, 1
      %p74 = scmp.ne.s32.totalorder %s69, %s71
      %p75 = scmp.eq.s32.totalorder %s14, 0
      %p76 = por %p74, %p75
      %p77 = scmp.ne.s32.totalorder %s69, %s71
      %p78 = scmp.eq.s32.totalorder %s19, 1
      %p79 = por %p77, %p78
      %p80 = scmp.ne.s32.totalorder %s71, %s72
      %p81 = scmp.eq.s32.totalorder %s19, 0
      %p82 = por %p80, %p81
      %p83 = scmp.ne.s32.totalorder %s71, %s72
      %p84 = scmp.eq.s32.totalorder %s20, 1
      %p85 = por %p83, %p84
      %p87 = scmp.ne.s32.totalorder %s72, %s86
      %p88 = scmp.eq.s32.totalorder %s20, 0
      %p89 = por %p87, %p88
      %s91 = sadd.s32 %s90, 1
      %p94 = scmp.eq.s32.totalorder %s14, 1
      %p95 = scmp.ne.s32.totalorder %s90, %s92
      %p96 = scmp.eq.s32.totalorder %s14, 0
      %p97 = por %p95, %p96
      %p98 = scmp.ne.s32.totalorder %s90, %s92
      %p99 = scmp.eq.s32.totalorder %s19, 1
      %p100 = por %p98, %p99
      %p101 = scmp.ne.s32.totalorder %s92, %s93
      %p102 = scmp.eq.s32.totalorder %s19, 0
      %p103 = por %p101, %p102
      %p104 = scmp.ne.s32.totalorder %s92, %s93
      %p105 = scmp.eq.s32.totalorder %s20, 1
      %p106 = por %p104, %p105
      %p108 = scmp.ne.s32.totalorder %s93, %s107
      %p109 = scmp.eq.s32.totalorder %s20, 0
      %p110 = por %p108, %p109
      %s112 = sadd.s32 %s111, 1
      %p115 = scmp.eq.s32.totalorder %s14, 1
      %p116 = scmp.ne.s32.totalorder %s111, %s113
      %p117 = scmp.eq.s32.totalorder %s14, 0
      %p118 = por %p116, %p117
      %p119 = scmp.ne.s32.totalorder %s111, %s113
      %p120 = scmp.eq.s32.totalorder %s19, 1
      %p121 = por %p119, %p120
      %p122 = scmp.ne.s32.totalorder %s113, %s114
      %p123 = scmp.eq.s32.totalorder %s19, 0
      %p124 = por %p122, %p123
      %p125 = scmp.ne.s32.totalorder %s113, %s114
      %p126 = scmp.eq.s32.totalorder %s20, 1
      %p127 = por %p125, %p126
      %p129 = scmp.ne.s32.totalorder %s114, %s128
      %p130 = scmp.eq.s32.totalorder %s20, 0
      %p131 = por %p129, %p130
      %s132 = ssub.s32 %s14, %s21
      %p133 = scmp.eq.s32.totalorder %s132, 0
      %s135 = sadd.s32 %s134, 1
      %s136 = scalar_select %p133, %s134, %s135
      %p139 = pneg %p133
      %p140 = scmp.eq.s32.totalorder %s14, 1
      %p141 = por %p139, %p140
      %p142 = scmp.ne.s32.totalorder %s134, %s137
      %p143 = scmp.eq.s32.totalorder %s14, 0
      %p144 = por %p142, %p143
      %p145 = scmp.ne.s32.totalorder %s134, %s137
      %p146 = scmp.eq.s32.totalorder %s19, 1
      %p147 = por %p145, %p146
      %p148 = scmp.ne.s32.totalorder %s137, %s138
      %p149 = scmp.eq.s32.totalorder %s19, 0
      %p150 = por %p148, %p149
      %p151 = scmp.ne.s32.totalorder %s137, %s138
      %p152 = scmp.eq.s32.totalorder %s20, 1
      %p153 = por %p151, %p152
      %p155 = scmp.ne.s32.totalorder %s138, %s154
      %p156 = scmp.eq.s32.totalorder %s20, 0
      %p157 = por %p155, %p156
      %p158 = scmp.le.s32.totalorder 1, %s14
      %p159 = scmp.lt.s32.totalorder %s14, 3
      %p160 = pnand %p158, %p159
      %p161 = pneg %p160
      // Predicated region
      $region9: #{tpu_custom_call.1} parent=5 // pred_check
        _
      $region10: #{tpu_custom_call.1} parent=5 // pred_check_branch
        %163 = sbr.rel (%p160) target = $region12
      $region11: #{tpu_custom_call.1} parent=5 // pred_region
        %s164 = ssub.s32 %s14, 1
        // Predicated region
        $region13: #{tpu_custom_call.1} parent=11 // pred_check
          %p165 = pneg %p61
        $region14: #{tpu_custom_call.1} parent=11 // pred_check_branch
          %167 = sbr.rel (%p165) target = $region16
        $region15: #{tpu_custom_call.1} parent=11 // pred_region
          _
        $region16: #{tpu_custom_call.1} parent=11 // pred_fallthru
          _
        // Predicated region
        $region17: #{tpu_custom_call.1} parent=11 // pred_check
          %p168 = pneg %p82
        $region18: #{tpu_custom_call.1} parent=11 // pred_check_branch
          %170 = sbr.rel (%p168) target = $region20
        $region19: #{tpu_custom_call.1} parent=11 // pred_region
          _
        $region20: #{tpu_custom_call.1} parent=11 // pred_fallthru
          _
        // Predicated region
        $region21: #{tpu_custom_call.1} parent=11 // pred_check
          %p171 = pneg %p103
        $region22: #{tpu_custom_call.1} parent=11 // pred_check_branch
          %173 = sbr.rel (%p171) target = $region24
        $region23: #{tpu_custom_call.1} parent=11 // pred_region
          _
        $region24: #{tpu_custom_call.1} parent=11 // pred_fallthru
          _
        // Predicated region
        $region25: #{tpu_custom_call.1} parent=11 // pred_check
          %p174 = pneg %p124
        $region26: #{tpu_custom_call.1} parent=11 // pred_check_branch
          %176 = sbr.rel (%p174) target = $region28
        $region27: #{tpu_custom_call.1} parent=11 // pred_region
          _
        $region28: #{tpu_custom_call.1} parent=11 // pred_fallthru
          _
      $region12: #{tpu_custom_call.1} parent=5 // pred_fallthru
        _
      %p177 = scmp.lt.s32.totalorder %s14, 2
      // Predicated region
      $region29: #{tpu_custom_call.1} parent=5 // pred_check
        %p178 = pneg %p177
      $region30: #{tpu_custom_call.1} parent=5 // pred_check_branch
        %180 = sbr.rel (%p178) target = $region32
      $region31: #{tpu_custom_call.1} parent=5 // pred_region
        // Predicated region
        $region33: #{tpu_custom_call.1} parent=31 // pred_check
          %p181 = pneg %p34
        $region34: #{tpu_custom_call.1} parent=31 // pred_check_branch
          %183 = sbr.rel (%p181) target = $region36
        $region35: #{tpu_custom_call.1} parent=31 // pred_region
          %p184 = scmp.lt.s32.totalorder %s14, 1
          %s185 = scalar_select %p184, %s14, 1
          %s186 = smul.addr %s185, 8
          %s187 = smul.addr %s186, 8
          %s188 = scalar_lea.vmem %s0, %s187
        $region36: #{tpu_custom_call.1} parent=31 // pred_fallthru
          _
      $region32: #{tpu_custom_call.1} parent=5 // pred_fallthru
        _
      %p189 = scmp.le.s32.totalorder 1, %s14
      %p190 = scmp.lt.s32.totalorder %s14, 3
      %p191 = pnand %p189, %p190
      %p192 = pneg %p191
      // Predicated region
      $region37: #{tpu_custom_call.1} parent=5 // pred_check
        _
      $region38: #{tpu_custom_call.1} parent=5 // pred_check_branch
        %194 = sbr.rel (%p191) target = $region40
      $region39: #{tpu_custom_call.1} parent=5 // pred_region
        %s195 = ssub.s32 %s14, 1
        %p196 = scmp.lt.s32.totalorder %s19, 1
        %s197 = scalar_select %p196, %s19, 1
        %s198 = smul.addr %s197, 8
        %s199 = smul.addr %s198, 8
        %s200 = scalar_lea.vmem %s0, %s199
        %p201 = pneg %p40
        %p202 = pneg %p37
        %p203 = pneg %p61
        %p204 = pneg %p58
        %p205 = pneg %p82
        %p206 = pneg %p79
        %p207 = pneg %p103
        %p208 = pneg %p100
        %p209 = pneg %p124
        %p210 = pneg %p121
        %p211 = pneg %p150
        %p212 = pneg %p147
        %s213 = sand.u32 %s137, 1
        %s214 = scalar_lea.sflag [#allocation3], %s213
        %s215 = sand.u32 %s137, 1
        %s216 = smul.addr %s215, 64
        %s217 = scalar_lea.vmem [#allocation2], %s216
        %p218 = scmp.lt.s32.totalorder %s19, 1
        %s219 = scalar_select %p218, %s19, 1
        %s220 = smul.addr %s219, 8
        %s221 = smul.addr %s220, 8
        %s222 = scalar_lea.vmem %s0, %s221
        %v223 = vld [vmem:[%s222] sm:$0xff]
        %v224 = vld [vmem:[%s222 + $0x8] sm:$0xff]
        %v225 = vld [vmem:[%s222 + $0x10] sm:$0xff]
        %v226 = vld [vmem:[%s222 + $0x18] sm:$0xff]
        %v227 = vld [vmem:[%s222 + $0x20] sm:$0xff]
        %v228 = vld [vmem:[%s222 + $0x28] sm:$0xff]
        %v229 = vld [vmem:[%s222 + $0x30] sm:$0xff]
        %v230 = vld [vmem:[%s222 + $0x38] sm:$0xff]
        %v231 = vadd.f32 %v223, %v224
        %232 = vadd.xlane.f32.xlu0 %v231
        %v233 = vpop.xlane.xlu0 %232
        %v234 = vadd.f32 %v225, %v226
        %235 = vadd.xlane.f32.xlu0 %v234
        %v236 = vpop.xlane.xlu0 %235
        %v237 = vadd.f32 %v227, %v228
        %238 = vadd.xlane.f32.xlu0 %v237
        %v239 = vpop.xlane.xlu0 %238
        %v240 = vadd.f32 %v229, %v230
        %241 = vadd.xlane.f32.xlu0 %v240
        %v242 = vpop.xlane.xlu0 %241
        %v243 = vmul.f32 %v233, 0.00390625
        %v244 = vmul.f32 %v236, 0.00390625
        %v245 = vmul.f32 %v239, 0.00390625
        %v246 = vmul.f32 %v242, 0.00390625
        %v247 = vmax.f32 %v223, %v224
        %248 = vmax.xlane.f32.xlu0 %v247
        %v249 = vpop.xlane.xlu0 %248
        %v250 = vmax.f32 %v225, %v226
        %251 = vmax.xlane.f32.xlu0 %v250
        %v252 = vpop.xlane.xlu0 %251
        %v253 = vmax.f32 %v227, %v228
        %254 = vmax.xlane.f32.xlu0 %v253
        %v255 = vpop.xlane.xlu0 %254
        %v256 = vmax.f32 %v229, %v230
        %257 = vmax.xlane.f32.xlu0 %v256
        %v258 = vpop.xlane.xlu0 %257
        %v259 = vld [vmem:[%s1] sm:$0xff]
        %v260 = vld [vmem:[%s1 + $0x8] sm:$0xff]
        %v261 = vld [vmem:[%s1 + $0x10] sm:$0xff]
        %v262 = vld [vmem:[%s1 + $0x18] sm:$0xff]
        %v263 = vld [vmem:[%s2] sm:$0x1]
        %v264 = vld [vmem:[%s3] sm:$0xff]
        %v265 = vld [vmem:[%s3 + $0x8] sm:$0xff]
        %v266 = vld [vmem:[%s3 + $0x10] sm:$0xff]
        %v267 = vld [vmem:[%s3 + $0x18] sm:$0xff]
        %v268 = vld [vmem:[%s3 + $0x20] sm:$0xff]
        %v269 = vld [vmem:[%s3 + $0x28] sm:$0xff]
        %v270 = vld [vmem:[%s3 + $0x30] sm:$0xff]
        %v271 = vld [vmem:[%s3 + $0x38] sm:$0xff]
        %v272 = vld [vmem:[%s3 + $0x40] sm:$0xff]
        %v273 = vld [vmem:[%s3 + $0x48] sm:$0xff]
        %v274 = vld [vmem:[%s3 + $0x50] sm:$0xff]
        %v275 = vld [vmem:[%s3 + $0x58] sm:$0xff]
        %v276 = vld [vmem:[%s3 + $0x60] sm:$0xff]
        %v277 = vld [vmem:[%s3 + $0x68] sm:$0xff]
        %v278 = vld [vmem:[%s3 + $0x70] sm:$0xff]
        %v279 = vld [vmem:[%s3 + $0x78] sm:$0xff]
        %v280 = vld [vmem:[%s4] sm:$0x1]
        %v285 = vlaneseq
        %v286 = vand.u32 %v285, 127
        %v287 = vlaneseq
        %v288 = vshrl.u32 %v287, 7
        %v289 = vsub.s32 %v286, %v288
        %v290 = vrot.slane %v243, %v289
        %v291 = vadd.s32 %v286, 4294967288
        %v292 = vlaneseq
        %v293 = vshrl.u32 %v292, 7
        %v294 = vsub.s32 %v291, %v293
        %v295 = vrot.slane %v244, %v294
        %vm296 = vcmask 130112
        %v297 = vsel %vm296, %v295, %v290
        %v298 = vadd.s32 %v286, 4294967280
        %v299 = vlaneseq
        %v300 = vshrl.u32 %v299, 7
        %v301 = vsub.s32 %v298, %v300
        %v302 = vrot.slane %v245, %v301
        %vm303 = vcmask 195712
        %v304 = vsel %vm303, %v302, %v297
        %v305 = vadd.s32 %v286, 4294967272
        %v306 = vlaneseq
        %v307 = vshrl.u32 %v306, 7
        %v308 = vsub.s32 %v305, %v307
        %v309 = vrot.slane %v246, %v308
        %vm310 = vcmask 261312
        %v311 = vsel %vm310, %v309, %v304
        %vm312 = vcmask 261120
        %v313 = vsel %vm312, %v311, 0
        %315 = vmatprep.subr.mxu0 0.0
        %316 = vmatpush1.msra.mxu0 0.0
        %317 = vmatprep.subr.mxu0 0.0
        %318 = vmatpush1.msra.mxu0 0.0
        %319 = vmatprep.subr.mxu0 0.0
        %320 = vmatpush1.msra.mxu0 0.0
        %321 = vmatprep.subr.mxu0 0.0
        %322 = vmatpush1.msra.mxu0 0.0
        %323 = vmatprep.subr.mxu0 0.0
        %324 = vmatpush1.msra.mxu0 0.0
        %325 = vmatprep.subr.mxu0 0.0
        %326 = vmatpush1.msra.mxu0 0.0
        %327 = vmatprep.subr.mxu0 0.0
        %328 = vmatpush1.msra.mxu0 0.0
        %329 = vmatprep.subr.mxu0 0.0
        %330 = vmatpush1.msra.mxu0 0.0
        %331 = vmatprep.subr.mxu0 0.0
        %332 = vmatpush1.msra.mxu0 0.0
        %333 = vmatprep.subr.mxu0 0.0
        %334 = vmatpush1.msra.mxu0 0.0
        %335 = vmatprep.subr.mxu0 0.0
        %336 = vmatpush1.msra.mxu0 0.0
        %337 = vmatprep.subr.mxu0 0.0
        %338 = vmatpush1.msra.mxu0 0.0
        %339 = vmatprep.subr.mxu0 0.0
        %340 = vmatpush1.msra.mxu0 %v262
        %341 = vmatprep.subr.mxu0 0.0
        %342 = vmatpush1.msra.mxu0 %v261
        %343 = vmatprep.subr.mxu0 0.0
        %344 = vmatpush1.msra.mxu0 %v260
        %345 = vmatprep.subr.mxu0 0.0
        %346 = vmatpush1.msra.mxu0 %v259
        %347 = vmatprep.subr.mxu0 0.0
        %348 = vmatpush2.msra.mxu0 0.0
        %349 = vmatprep.subr.mxu0 0.0
        %350 = vmatpush2.msra.mxu0 0.0
        %351 = vmatprep.subr.mxu0 0.0
        %352 = vmatpush2.msra.mxu0 0.0
        %353 = vmatprep.subr.mxu0 0.0
        %354 = vmatpush2.msra.mxu0 0.0
        %355 = vmatprep.subr.mxu0 0.0
        %356 = vmatpush2.msra.mxu0 0.0
        %357 = vmatprep.subr.mxu0 0.0
        %358 = vmatpush2.msra.mxu0 0.0
        %359 = vmatprep.subr.mxu0 0.0
        %360 = vmatpush2.msra.mxu0 0.0
        %361 = vmatprep.subr.mxu0 0.0
        %362 = vmatpush2.msra.mxu0 0.0
        %363 = vmatprep.subr.mxu0 0.0
        %364 = vmatpush2.msra.mxu0 0.0
        %365 = vmatprep.subr.mxu0 0.0
        %366 = vmatpush2.msra.mxu0 0.0
        %367 = vmatprep.subr.mxu0 0.0
        %368 = vmatpush2.msra.mxu0 0.0
        %369 = vmatprep.subr.mxu0 0.0
        %370 = vmatpush2.msra.mxu0 0.0
        %371 = vmatprep.subr.mxu0 0.0
        %372 = vmatpush2.msra.mxu0 0.0
        %373 = vmatprep.subr.mxu0 0.0
        %374 = vmatpush2.msra.mxu0 0.0
        %375 = vmatprep.subr.mxu0 0.0
        %376 = vmatpush2.msra.mxu0 0.0
        %377 = vmatprep.subr.mxu0 0.0
        %378 = vmatpush2.msra.mxu0 0.0
        %379 = vmatprep.mubr.f32.mxu0 0.0
        %380 = vmatmul.mubr.f32.gmra.mxu0 %v313
        %v381 = vpop.f32.mrf.mxu0
        %v382 = vadd.f32 %v263, %v381
        %v383 = vpop.f32.mrf.mxu0
        %384 = vdwg.mxu0
        %v385 = vmax.f32 %v382, 0.0
        %386 = vmatprep.subr.mxu0 0.0
        %387 = vmatpush1.msra.mxu0 %v279
        %388 = vmatprep.subr.mxu0 0.0
        %389 = vmatpush1.msra.mxu0 %v278
        %390 = vmatprep.subr.mxu0 0.0
        %391 = vmatpush1.msra.mxu0 %v277
        %392 = vmatprep.subr.mxu0 0.0
        %393 = vmatpush1.msra.mxu0 %v276
        %394 = vmatprep.subr.mxu0 0.0
        %395 = vmatpush1.msra.mxu0 %v275
        %396 = vmatprep.subr.mxu0 0.0
        %397 = vmatpush1.msra.mxu0 %v274
        %398 = vmatprep.subr.mxu0 0.0
        %399 = vmatpush1.msra.mxu0 %v273
        %400 = vmatprep.subr.mxu0 0.0
        %401 = vmatpush1.msra.mxu0 %v272
        %402 = vmatprep.subr.mxu0 0.0
        %403 = vmatpush1.msra.mxu0 %v271
        %404 = vmatprep.subr.mxu0 0.0
        %405 = vmatpush1.msra.mxu0 %v270
        %406 = vmatprep.subr.mxu0 0.0
        %407 = vmatpush1.msra.mxu0 %v269
        %408 = vmatprep.subr.mxu0 0.0
        %409 = vmatpush1.msra.mxu0 %v268
        %410 = vmatprep.subr.mxu0 0.0
        %411 = vmatpush1.msra.mxu0 %v267
        %412 = vmatprep.subr.mxu0 0.0
        %413 = vmatpush1.msra.mxu0 %v266
        %414 = vmatprep.subr.mxu0 0.0
        %415 = vmatpush1.msra.mxu0 %v265
        %416 = vmatprep.subr.mxu0 0.0
        %417 = vmatpush1.msra.mxu0 %v264
        %418 = vmatprep.subr.mxu0 0.0
        %419 = vmatpush2.msra.mxu0 0.0
        %420 = vmatprep.subr.mxu0 0.0
        %421 = vmatpush2.msra.mxu0 0.0
        %422 = vmatprep.subr.mxu0 0.0
        %423 = vmatpush2.msra.mxu0 0.0
        %424 = vmatprep.subr.mxu0 0.0
        %425 = vmatpush2.msra.mxu0 0.0
        %426 = vmatprep.subr.mxu0 0.0
        %427 = vmatpush2.msra.mxu0 0.0
        %428 = vmatprep.subr.mxu0 0.0
        %429 = vmatpush2.msra.mxu0 0.0
        %430 = vmatprep.subr.mxu0 0.0
        %431 = vmatpush2.msra.mxu0 0.0
        %432 = vmatprep.subr.mxu0 0.0
        %433 = vmatpush2.msra.mxu0 0.0
        %434 = vmatprep.subr.mxu0 0.0
        %435 = vmatpush2.msra.mxu0 0.0
        %436 = vmatprep.subr.mxu0 0.0
        %437 = vmatpush2.msra.mxu0 0.0
        %438 = vmatprep.subr.mxu0 0.0
        %439 = vmatpush2.msra.mxu0 0.0
        %440 = vmatprep.subr.mxu0 0.0
        %441 = vmatpush2.msra.mxu0 0.0
        %442 = vmatprep.subr.mxu0 0.0
        %443 = vmatpush2.msra.mxu0 0.0
        %444 = vmatprep.subr.mxu0 0.0
        %445 = vmatpush2.msra.mxu0 0.0
        %446 = vmatprep.subr.mxu0 0.0
        %447 = vmatpush2.msra.mxu0 0.0
        %448 = vmatprep.subr.mxu0 0.0
        %449 = vmatpush2.msra.mxu0 0.0
        %450 = vmatprep.mubr.f32.mxu0 0.0
        %451 = vmatmul.mubr.f32.gmra.mxu0 %v385
        %v452 = vpop.f32.mrf.mxu0
        %v453 = vadd.f32 %v280, %v452
        %v454 = vpop.f32.mrf.mxu0
        %455 = vdwg.mxu0
        %v460 = vlaneseq
        %v461 = vshrl.u32 %v460, 7
        %v462 = vsub.s32 %v286, %v461
        %v463 = vrot.slane %v249, %v462
        %v464 = vlaneseq
        %v465 = vshrl.u32 %v464, 7
        %v466 = vsub.s32 %v291, %v465
        %v467 = vrot.slane %v252, %v466
        %v468 = vsel %vm296, %v467, %v463
        %v469 = vlaneseq
        %v470 = vshrl.u32 %v469, 7
        %v471 = vsub.s32 %v298, %v470
        %v472 = vrot.slane %v255, %v471
        %v473 = vsel %vm303, %v472, %v468
        %v474 = vlaneseq
        %v475 = vshrl.u32 %v474, 7
        %v476 = vsub.s32 %v305, %v475
        %v477 = vrot.slane %v258, %v476
        %v478 = vsel %vm310, %v477, %v473
        %v479 = vsel %vm312, %v478, 0
        %481 = vmatprep.subr.mxu0 0.0
        %482 = vmatpush1.msra.mxu0 0.0
        %483 = vmatprep.subr.mxu0 0.0
        %484 = vmatpush1.msra.mxu0 0.0
        %485 = vmatprep.subr.mxu0 0.0
        %486 = vmatpush1.msra.mxu0 0.0
        %487 = vmatprep.subr.mxu0 0.0
        %488 = vmatpush1.msra.mxu0 0.0
        %489 = vmatprep.subr.mxu0 0.0
        %490 = vmatpush1.msra.mxu0 0.0
        %491 = vmatprep.subr.mxu0 0.0
        %492 = vmatpush1.msra.mxu0 0.0
        %493 = vmatprep.subr.mxu0 0.0
        %494 = vmatpush1.msra.mxu0 0.0
        %495 = vmatprep.subr.mxu0 0.0
        %496 = vmatpush1.msra.mxu0 0.0
        %497 = vmatprep.subr.mxu0 0.0
        %498 = vmatpush1.msra.mxu0 0.0
        %499 = vmatprep.subr.mxu0 0.0
        %500 = vmatpush1.msra.mxu0 0.0
        %501 = vmatprep.subr.mxu0 0.0
        %502 = vmatpush1.msra.mxu0 0.0
        %503 = vmatprep.subr.mxu0 0.0
        %504 = vmatpush1.msra.mxu0 0.0
        %505 = vmatprep.subr.mxu0 0.0
        %506 = vmatpush1.msra.mxu0 %v262
        %507 = vmatprep.subr.mxu0 0.0
        %508 = vmatpush1.msra.mxu0 %v261
        %509 = vmatprep.subr.mxu0 0.0
        %510 = vmatpush1.msra.mxu0 %v260
        %511 = vmatprep.subr.mxu0 0.0
        %512 = vmatpush1.msra.mxu0 %v259
        %513 = vmatprep.subr.mxu0 0.0
        %514 = vmatpush2.msra.mxu0 0.0
        %515 = vmatprep.subr.mxu0 0.0
        %516 = vmatpush2.msra.mxu0 0.0
        %517 = vmatprep.subr.mxu0 0.0
        %518 = vmatpush2.msra.mxu0 0.0
        %519 = vmatprep.subr.mxu0 0.0
        %520 = vmatpush2.msra.mxu0 0.0
        %521 = vmatprep.subr.mxu0 0.0
        %522 = vmatpush2.msra.mxu0 0.0
        %523 = vmatprep.subr.mxu0 0.0
        %524 = vmatpush2.msra.mxu0 0.0
        %525 = vmatprep.subr.mxu0 0.0
        %526 = vmatpush2.msra.mxu0 0.0
        %527 = vmatprep.subr.mxu0 0.0
        %528 = vmatpush2.msra.mxu0 0.0
        %529 = vmatprep.subr.mxu0 0.0
        %530 = vmatpush2.msra.mxu0 0.0
        %531 = vmatprep.subr.mxu0 0.0
        %532 = vmatpush2.msra.mxu0 0.0
        %533 = vmatprep.subr.mxu0 0.0
        %534 = vmatpush2.msra.mxu0 0.0
        %535 = vmatprep.subr.mxu0 0.0
        %536 = vmatpush2.msra.mxu0 0.0
        %537 = vmatprep.subr.mxu0 0.0
        %538 = vmatpush2.msra.mxu0 0.0
        %539 = vmatprep.subr.mxu0 0.0
        %540 = vmatpush2.msra.mxu0 0.0
        %541 = vmatprep.subr.mxu0 0.0
        %542 = vmatpush2.msra.mxu0 0.0
        %543 = vmatprep.subr.mxu0 0.0
        %544 = vmatpush2.msra.mxu0 0.0
        %545 = vmatprep.mubr.f32.mxu0 0.0
        %546 = vmatmul.mubr.f32.gmra.mxu0 %v479
        %v547 = vpop.f32.mrf.mxu0
        %v548 = vadd.f32 %v263, %v547
        %v549 = vpop.f32.mrf.mxu0
        %550 = vdwg.mxu0
        %v551 = vmax.f32 %v548, 0.0
        %552 = vmatprep.subr.mxu0 0.0
        %553 = vmatpush1.msra.mxu0 %v279
        %554 = vmatprep.subr.mxu0 0.0
        %555 = vmatpush1.msra.mxu0 %v278
        %556 = vmatprep.subr.mxu0 0.0
        %557 = vmatpush1.msra.mxu0 %v277
        %558 = vmatprep.subr.mxu0 0.0
        %559 = vmatpush1.msra.mxu0 %v276
        %560 = vmatprep.subr.mxu0 0.0
        %561 = vmatpush1.msra.mxu0 %v275
        %562 = vmatprep.subr.mxu0 0.0
        %563 = vmatpush1.msra.mxu0 %v274
        %564 = vmatprep.subr.mxu0 0.0
        %565 = vmatpush1.msra.mxu0 %v273
        %566 = vmatprep.subr.mxu0 0.0
        %567 = vmatpush1.msra.mxu0 %v272
        %568 = vmatprep.subr.mxu0 0.0
        %569 = vmatpush1.msra.mxu0 %v271
        %570 = vmatprep.subr.mxu0 0.0
        %571 = vmatpush1.msra.mxu0 %v270
        %572 = vmatprep.subr.mxu0 0.0
        %573 = vmatpush1.msra.mxu0 %v269
        %574 = vmatprep.subr.mxu0 0.0
        %575 = vmatpush1.msra.mxu0 %v268
        %576 = vmatprep.subr.mxu0 0.0
        %577 = vmatpush1.msra.mxu0 %v267
        %578 = vmatprep.subr.mxu0 0.0
        %579 = vmatpush1.msra.mxu0 %v266
        %580 = vmatprep.subr.mxu0 0.0
        %581 = vmatpush1.msra.mxu0 %v265
        %582 = vmatprep.subr.mxu0 0.0
        %583 = vmatpush1.msra.mxu0 %v264
        %584 = vmatprep.subr.mxu0 0.0
        %585 = vmatpush2.msra.mxu0 0.0
        %586 = vmatprep.subr.mxu0 0.0
        %587 = vmatpush2.msra.mxu0 0.0
        %588 = vmatprep.subr.mxu0 0.0
        %589 = vmatpush2.msra.mxu0 0.0
        %590 = vmatprep.subr.mxu0 0.0
        %591 = vmatpush2.msra.mxu0 0.0
        %592 = vmatprep.subr.mxu0 0.0
        %593 = vmatpush2.msra.mxu0 0.0
        %594 = vmatprep.subr.mxu0 0.0
        %595 = vmatpush2.msra.mxu0 0.0
        %596 = vmatprep.subr.mxu0 0.0
        %597 = vmatpush2.msra.mxu0 0.0
        %598 = vmatprep.subr.mxu0 0.0
        %599 = vmatpush2.msra.mxu0 0.0
        %600 = vmatprep.subr.mxu0 0.0
        %601 = vmatpush2.msra.mxu0 0.0
        %602 = vmatprep.subr.mxu0 0.0
        %603 = vmatpush2.msra.mxu0 0.0
        %604 = vmatprep.subr.mxu0 0.0
        %605 = vmatpush2.msra.mxu0 0.0
        %606 = vmatprep.subr.mxu0 0.0
        %607 = vmatpush2.msra.mxu0 0.0
        %608 = vmatprep.subr.mxu0 0.0
        %609 = vmatpush2.msra.mxu0 0.0
        %610 = vmatprep.subr.mxu0 0.0
        %611 = vmatpush2.msra.mxu0 0.0
        %612 = vmatprep.subr.mxu0 0.0
        %613 = vmatpush2.msra.mxu0 0.0
        %614 = vmatprep.subr.mxu0 0.0
        %615 = vmatpush2.msra.mxu0 0.0
        %616 = vmatprep.mubr.f32.mxu0 0.0
        %617 = vmatmul.mubr.f32.gmra.mxu0 %v551
        %v618 = vpop.f32.mrf.mxu0
        %v619 = vadd.f32 %v280, %v618
        %v620 = vpop.f32.mrf.mxu0
        %621 = vdwg.mxu0
        %v622 = vadd.f32 %v453, %v619
        %v623 = vsub.f32 0.0, %v622
        %v624 = vmul.f32 %v623, 1.442695
        %v625 = vpow.pop %v624
        %v626 = vadd.f32 %v625, 1.0
        %v627 = vrcp.pop %v626
        %v628 = vmul.f32 1.0, %v627
        %v629 = vlaneseq
        %v630 = vshrl.u32 %v629, 7
        %v631 = vsub.s32 0, %v630
        %v632 = vrot.slane %v628, %v631
        %634 = vbcast.lane.b32.xlu0 %v632, 256
        %v635 = vpop.permute.xlu0 %634
        %s637 = sor.u32 256, 8
        %638 = vbcast.lane.b32.xlu0 %v632, %s637
        %v639 = vpop.permute.xlu0 %638
        %s641 = sor.u32 256, 16
        %642 = vbcast.lane.b32.xlu0 %v632, %s641
        %v643 = vpop.permute.xlu0 %642
        %s645 = sor.u32 256, 24
        %646 = vbcast.lane.b32.xlu0 %v632, %s645
        %v647 = vpop.permute.xlu0 %646
        %v648 = vmul.f32 %v223, %v635
        %v649 = vmul.f32 %v224, %v635
        %v650 = vmul.f32 %v225, %v639
        %v651 = vmul.f32 %v226, %v639
        %v652 = vmul.f32 %v227, %v643
        %v653 = vmul.f32 %v228, %v643
        %v654 = vmul.f32 %v229, %v647
        %v655 = vmul.f32 %v230, %v647
        %656 = vst [vmem:[%s217] sm:$0xff] %v648
        %657 = vst [vmem:[%s217 + $0x8] sm:$0xff] %v649
        %658 = vst [vmem:[%s217 + $0x10] sm:$0xff] %v650
        %659 = vst [vmem:[%s217 + $0x18] sm:$0xff] %v651
        %660 = vst [vmem:[%s217 + $0x20] sm:$0xff] %v652
        %661 = vst [vmem:[%s217 + $0x28] sm:$0xff] %v653
        %662 = vst [vmem:[%s217 + $0x30] sm:$0xff] %v654
        %663 = vst [vmem:[%s217 + $0x38] sm:$0xff] %v655
        %s664 = sand.u32 %s137, 1
        %s665 = scalar_lea.sflag [#allocation3], %s664
        %s666 = sand.u32 %s137, 1
        %s667 = smul.addr %s666, 64
        %s668 = scalar_lea.vmem [#allocation2], %s667
        // Predicated region
        $region41: #{tpu_custom_call.1} parent=39 // pred_check
          %p669 = pneg %p147
        $region42: #{tpu_custom_call.1} parent=39 // pred_check_branch
          %671 = sbr.rel (%p669) target = $region44
        $region43: #{tpu_custom_call.1} parent=39 // pred_region
          %s673 = ssub.s32 1024, 1024
          %674 = vsyncadd %s665, %s673
          %s675 = smul.addr %s19, 8
          %s676 = smul.addr %s675, 128
          %s677 = scalar_lea.hbm %s5, %s676
          %s678 = sshll.u32 %s668, 4
          %s679 = int_to_ptr.vmem [resolvable:$true] %s678
          %684 = dma.vmem_to_hbm [thread:$0]  %s679, 1024, %s677, %s665, 256, 256, 16
        $region44: #{tpu_custom_call.1} parent=39 // pred_fallthru
          _
      $region40: #{tpu_custom_call.1} parent=5 // pred_fallthru
        _
      %p685 = scmp.le.s32.totalorder 2, %s14
      // Predicated region
      $region45: #{tpu_custom_call.1} parent=5 // pred_check
        %p686 = pneg %p685
      $region46: #{tpu_custom_call.1} parent=5 // pred_check_branch
        %688 = sbr.rel (%p686) target = $region48
      $region47: #{tpu_custom_call.1} parent=5 // pred_region
        %s689 = ssub.s32 %s14, 2
        // Predicated region
        $region49: #{tpu_custom_call.1} parent=47 // pred_check
          %p690 = pneg %p153
        $region50: #{tpu_custom_call.1} parent=47 // pred_check_branch
          %692 = sbr.rel (%p690) target = $region52
        $region51: #{tpu_custom_call.1} parent=47 // pred_region
          %s693 = sand.u32 %s138, 1
          %s694 = scalar_lea.sflag [#allocation3], %s693
          %s695 = sand.u32 %s138, 1
          %s696 = smul.addr %s695, 64
          %s697 = scalar_lea.vmem [#allocation2], %s696
          %698 = dma.done %s694, 1024
        $region52: #{tpu_custom_call.1} parent=47 // pred_fallthru
          _
      $region48: #{tpu_custom_call.1} parent=5 // pred_fallthru
        _
    $region6: #{tpu_custom_call.1} parent=1 // loop_footer
      %s18 = sadd.s32 1, %s14
    $region7: #{tpu_custom_call.1} parent=1 // loop_footer_branch
      %13 = sbr.rel target = $region3
    $region8: #{tpu_custom_call.1} parent=1 // loop_exit
      _
    %699 = vsyncpa [#allocation3], 1
    %s700 = scalar_lea.sflag [#allocation3], 1
    %701 = vsyncpa %s700, 1

</llo_original>
